<compile_context>
chip_gen: v5e
topology: v5e:2x2
jax: 0.10.0
libtpu: 0.0.40
codegen_flags: <defaults>
</compile_context>

<pallas_src>
from functools import partial

import jax
import jax.numpy as jnp
from jax import lax
from jax.experimental import pallas as pl
from jax.experimental.pallas import tpu as pltpu

BATCH = 2
C_IN = 128           # c_in (channels / d_model) — kept at 128 for lane-dense layout
SEQ = 64             # sequence length (must be even for the stride-2 conv)
BN_EPS = 1e-5


# ---------------------------------------------------------------------------
# Fused kernel: circular-pad stride-2 conv (as one matmul) + folded BN + ELU
# ---------------------------------------------------------------------------
def _conv_bn_elu_kernel(x_ref, w_ref, b_ref, o_ref, *, C):
    # x_ref: (1, Lh, 2C)  lanes hold [x_{2t} | x_{2t+1}] pairs of time steps
    # w_ref: (3C, C)      BN-folded conv weight, row blocks = taps for
    #                     [x_{2t-1}; x_{2t}; x_{2t+1}]
    # b_ref: (1, C)       BN-folded bias
    # o_ref: (1, Lh, C)
    xb = x_ref[0]                            # (Lh, 2C)
    xe = xb[:, :C]                           # x[2t]
    xo = xb[:, C:]                           # x[2t + 1]
    xp = jnp.roll(xo, 1, axis=0)             # x[(2t - 1) mod L]  -> circular padding
    xcat = jnp.concatenate([xp, xe, xo], axis=-1)                   # (Lh, 3C)
    y = jnp.dot(xcat, w_ref[...], preferred_element_type=jnp.float32) + b_ref[...]
    # ELU (alpha = 1)
    o_ref[0] = jnp.where(y > 0.0, y, jnp.exp(jnp.minimum(y, 0.0)) - 1.0)


# ---------------------------------------------------------------------------
# Wrapper: fold BN into the conv, single pallas_call
# ---------------------------------------------------------------------------
@jax.jit
def conv_layer_forward(x, params):
    """x: (B, L, C)  ->  (B, L // 2, C)   (matches ConvLayer.forward)."""
    B, L, C = x.shape
    assert L % 2 == 0, "stride-2 circular conv assumes even sequence length"
    Lh = L // 2

    w = params["conv_w"]                     # (C_out, C_in, 3)  PyTorch Conv1d layout
    b = params["conv_b"]                     # (C,)
    scale = params["bn_gamma"] * lax.rsqrt(params["bn_var"] + BN_EPS)
    shift = params["bn_beta"] - scale * params["bn_mean"]

    # Conv taps: k=0 hits x_{2t-1}, k=1 hits x_{2t}, k=2 hits x_{2t+1}  (circular pad=1)
    w_cat = jnp.concatenate([w[:, :, 0].T, w[:, :, 1].T, w[:, :, 2].T], axis=0)  # (3C, C)
    w_eff = (w_cat * scale[None, :]).astype(jnp.float32)            # BN folded into weight
    b_eff = ((scale * b + shift)[None, :]).astype(jnp.float32)      # (1, C)

    # Free row-major reshape: lanes = [x_{2t} | x_{2t+1}]  (no transpose, no copy)
    xr = x.reshape(B, Lh, 2 * C)

    return pl.pallas_call(
        partial(_conv_bn_elu_kernel, C=C),
        out_shape=jax.ShapeDtypeStruct((B, Lh, C), jnp.float32),
        grid=(B,),
        in_specs=[
            pl.BlockSpec((1, Lh, 2 * C), lambda i: (i, 0, 0)),
            pl.BlockSpec((3 * C, C), lambda i: (0, 0)),
            pl.BlockSpec((1, C), lambda i: (0, 0)),
        ],
        out_specs=pl.BlockSpec((1, Lh, C), lambda i: (i, 0, 0)),
        compiler_params=pltpu.CompilerParams(dimension_semantics=("parallel",)),
    )(xr, w_eff, b_eff)


# ---------------------------------------------------------------------------
# Pure-JAX reference (mirrors the PyTorch module, eval-mode BN)
# ---------------------------------------------------------------------------
def ref_forward(x, params):
    B, L, C = x.shape
    Lh = L // 2
    xt = jnp.swapaxes(x, 1, 2)                                       # (B, C, L)
    xpad = jnp.concatenate([xt[:, :, -1:], xt, xt[:, :, :1]], axis=-1)  # circular pad (1,1)
    w, b = params["conv_w"], params["conv_b"]
    y = jnp.zeros((B, C, Lh), jnp.float32)
    for k in range(3):
        xk = xpad[:, :, k:k + 2 * Lh:2]                              # (B, C_in, Lh)
        y = y + jnp.einsum("oi,bil->bol", w[:, :, k], xk,
                           precision=lax.Precision.HIGHEST)
    y = y + b[None, :, None]
    inv = lax.rsqrt(params["bn_var"] + BN_EPS)
    y = (y - params["bn_mean"][None, :, None]) * inv[None, :, None] \
        * params["bn_gamma"][None, :, None] + params["bn_beta"][None, :, None]
    y = jnp.where(y > 0.0, y, jnp.exp(jnp.minimum(y, 0.0)) - 1.0)    # ELU
    return jnp.swapaxes(y, 1, 2)                                     # (B, Lh, C)


# ---------------------------------------------------------------------------
# Deterministic parameter init (shapes follow ConvLayer.__init__)
# ---------------------------------------------------------------------------
def init_params(key):
    k1, k2, k3, k4, k5, k6 = jax.random.split(key, 6)
    C = C_IN
    return {
        "conv_w": jax.random.normal(k1, (C, C, 3), jnp.float32) / jnp.sqrt(3.0 * C),
        "conv_b": 0.05 * jax.random.normal(k2, (C,), jnp.float32),
        "bn_gamma": 1.0 + 0.1 * jax.random.normal(k3, (C,), jnp.float32),
        "bn_beta": 0.1 * jax.random.normal(k4, (C,), jnp.float32),
        "bn_mean": 0.1 * jax.random.normal(k5, (C,), jnp.float32),
        "bn_var": 1.0 + jnp.abs(0.1 * jax.random.normal(k6, (C,), jnp.float32)),
    }


if __name__ == "__main__":
    key = jax.random.PRNGKey(0)
    kx, kp = jax.random.split(key)
    x = jax.random.normal(kx, (BATCH, SEQ, C_IN), jnp.float32)
    params = init_params(kp)

    out = jax.block_until_ready(conv_layer_forward(x, params))
    ref = ref_forward(x, params)

    assert out.shape == (BATCH, SEQ // 2, C_IN), out.shape
    assert bool(jnp.all(jnp.isfinite(out)))
    assert bool(jnp.allclose(out, ref, atol=1e-2, rtol=1e-2)), \
        float(jnp.max(jnp.abs(out - ref)))
    print("KERNEL_OK")
</pallas_src>

<mosaic_0001>
module attributes {stable_mosaic.version = 11 : i64} {
  func.func @_conv_bn_elu_kernel(%arg0: i32, %arg1: memref<1x32x256xf32, #tpu.memory_space<vmem>>, %arg2: memref<384x128xf32, #tpu.memory_space<vmem>>, %arg3: memref<1x128xf32, #tpu.memory_space<vmem>>, %arg4: memref<1x32x128xf32, #tpu.memory_space<vmem>>) attributes {dimension_semantics = [#tpu.dimension_semantics<parallel>], iteration_bounds = array<i64: 2>, scalar_prefetch = 0 : i64, scratch_operands = 0 : i64, tpu.core_type = #tpu.core_type<tc>, window_params = [{transform_indices = @transform_0, window_bounds = array<i64: 1, 32, 256>}, {pipeline_mode = #tpu.pipeline_mode<synchronous>, transform_indices = @transform_1, window_bounds = array<i64: 384, 128>}, {pipeline_mode = #tpu.pipeline_mode<synchronous>, transform_indices = @transform_2, window_bounds = array<i64: 1, 128>}, {transform_indices = @transform_3, window_bounds = array<i64: 1, 32, 128>}]} {
    %c0 = arith.constant 0 : index
    %c0_0 = arith.constant 0 : index
    %c0_1 = arith.constant 0 : index
    %0 = vector.load %arg1[%c0, %c0_0, %c0_1] : memref<1x32x256xf32, #tpu.memory_space<vmem>>, vector<1x32x256xf32>
    %1 = vector.shape_cast %0 : vector<1x32x256xf32> to vector<32x256xf32>
    %2 = vector.extract_strided_slice %1 {offsets = [0, 0], sizes = [32, 128], strides = [1, 1]} : vector<32x256xf32> to vector<32x128xf32>
    %3 = vector.extract_strided_slice %1 {offsets = [0, 128], sizes = [32, 128], strides = [1, 1]} : vector<32x256xf32> to vector<32x128xf32>
    %4 = vector.extract_strided_slice %3 {offsets = [31, 0], sizes = [1, 128], strides = [1, 1]} : vector<32x128xf32> to vector<1x128xf32>
    %5 = vector.extract_strided_slice %3 {offsets = [0, 0], sizes = [31, 128], strides = [1, 1]} : vector<32x128xf32> to vector<31x128xf32>
    %6 = tpu.concatenate %4, %5 in 0 : vector<1x128xf32>, vector<31x128xf32> -> vector<32x128xf32>
    %7 = tpu.concatenate %6, %2, %3 in 1 : vector<32x128xf32>, vector<32x128xf32>, vector<32x128xf32> -> vector<32x384xf32>
    %c0_2 = arith.constant 0 : index
    %c0_3 = arith.constant 0 : index
    %8 = vector.load %arg2[%c0_2, %c0_3] : memref<384x128xf32, #tpu.memory_space<vmem>>, vector<384x128xf32>
    %cst = arith.constant dense<0.000000e+00> : vector<32x128xf32>
    %9 = tpu.matmul %7, %8, %cst {dimension_numbers = #tpu.dot_dimension_numbers<[1], [0], [0], [1], [0, 0, 1, 1], [], []>} : vector<32x384xf32>, vector<384x128xf32>, vector<32x128xf32> -> vector<32x128xf32>
    %c0_4 = arith.constant 0 : index
    %c0_5 = arith.constant 0 : index
    %10 = vector.load %arg3[%c0_4, %c0_5] : memref<1x128xf32, #tpu.memory_space<vmem>>, vector<1x128xf32>
    %11 = vector.broadcast %10 : vector<1x128xf32> to vector<32x128xf32>
    %12 = arith.addf %9, %11 : vector<32x128xf32>
    %cst_6 = arith.constant 0.000000e+00 : f32
    %13 = vector.broadcast %cst_6 : f32 to vector<32x128xf32>
    %14 = arith.cmpf ogt, %12, %13 : vector<32x128xf32>
    %cst_7 = arith.constant 0.000000e+00 : f32
    %15 = vector.broadcast %cst_7 : f32 to vector<32x128xf32>
    %16 = arith.minimumf %12, %15 : vector<32x128xf32>
    %17 = math.exp %16 : vector<32x128xf32>
    %cst_8 = arith.constant 1.000000e+00 : f32
    %18 = vector.broadcast %cst_8 : f32 to vector<32x128xf32>
    %19 = arith.subf %17, %18 : vector<32x128xf32>
    %20 = arith.select %14, %12, %19 : vector<32x128xi1>, vector<32x128xf32>
    %c0_9 = arith.constant 0 : index
    %c0_10 = arith.constant 0 : index
    %c0_11 = arith.constant 0 : index
    %21 = vector.load %arg4[%c0_9, %c0_10, %c0_11] : memref<1x32x128xf32, #tpu.memory_space<vmem>>, vector<1x32x128xf32>
    %22 = vector.shape_cast %21 : vector<1x32x128xf32> to vector<32x128xf32>
    %23 = vector.shape_cast %20 : vector<32x128xf32> to vector<1x32x128xf32>
    tpu.vector_store %arg4[%c0_9, %c0_10, %c0_11], %23 {strides = array<i32>} : memref<1x32x128xf32, #tpu.memory_space<vmem>>, vector<1x32x128xf32>,
    return
  }
  func.func @transform_0(%arg0: i32) -> (i32, i32, i32) {
    %c0_i32 = arith.constant 0 : i32
    %c0_i32_0 = arith.constant 0 : i32
    %c0_i32_1 = arith.constant 0 : i32
    return %arg0, %c0_i32, %c0_i32_0 : i32, i32, i32
  }
  func.func @transform_1(%arg0: i32) -> (i32, i32) {
    %c0_i32 = arith.constant 0 : i32
    %c0_i32_0 = arith.constant 0 : i32
    %c0_i32_1 = arith.constant 0 : i32
    return %c0_i32, %c0_i32_0 : i32, i32
  }
  func.func @transform_2(%arg0: i32) -> (i32, i32) {
    %c0_i32 = arith.constant 0 : i32
    %c0_i32_0 = arith.constant 0 : i32
    %c0_i32_1 = arith.constant 0 : i32
    return %c0_i32, %c0_i32_0 : i32, i32
  }
  func.func @transform_3(%arg0: i32) -> (i32, i32, i32) {
    %c0_i32 = arith.constant 0 : i32
    %c0_i32_0 = arith.constant 0 : i32
    %c0_i32_1 = arith.constant 0 : i32
    return %arg0, %c0_i32, %c0_i32_0 : i32, i32, i32
  }
}

</mosaic_0001>

<llo_original>
// kernel: conv_layer_forward.1
$region0: #{conv_layer_forward.1}
  #allocation0 [shape = 'u32[]', space=smem, size = 0x4, offset = 0x4, fixed_abs, tag = 'smem constant byte address 0x4 - core index']
  #allocation1 [shape = 'u32[72,128]{1,0:T(1,128)}', space=vmem, size = 0x9000, scoped, tag = 'internal scratch']
  %s0 = inlined_call_operand.vmem [shape: f32[2,32,256], index: 0, kind: input, shape index: {}]
  %s1 = inlined_call_operand.vmem [shape: f32[384,128], index: 1, kind: input, shape index: {}]
  %s2 = inlined_call_operand.vmem [shape: f32[1,128], index: 2, kind: input, shape index: {}]
  %s3 = inlined_call_operand.hbm [shape: f32[2,32,128], index: 3, kind: output, shape index: {}]
  %s4 = sld [smem:[#allocation0]]
  $region45: #{conv_layer_forward.1} parent=0
    _
  %s6 = ssub.s32 1, %s4
  %s7 = scalar_select 0, %s6, %s4
  $region1: #{conv_layer_forward.1} parent=0
    #allocation2 [shape = 'u8[32768]{0}', space=vmem, size = 0x8000, scoped, tag = 'output window, operand 0']
    #allocation3 [shape = 's32[2]{0}', space=sflag, size = 0x8, scoped, tag = 'scoped memory for conv_layer_forward.1']
    %8 = vsyncpa [#allocation3], 0
    %s9 = scalar_lea.sflag [#allocation3], 1
    %10 = vsyncpa %s9, 0
    loop: start=0, step=1, limit=4
    $region2: #{conv_layer_forward.1} parent=1 // loop_pre_header
      _
    $region3: #{conv_layer_forward.1} parent=1 // loop_header
      %s12 = sphi 0, %s16
      %p13 = scmp.ge.s32.totalorder %s12, 4
      %s22 = sphi 0, %s24
      %s25 = sphi 0, %s22
      %s26 = sphi 0, %s25
      %s42 = sphi 0, %s26
      %s46 = sphi 0, %s46
      %s48 = sphi 0, %s46
      %s49 = sphi 0, %s48
      %s63 = sphi 0, %s49
      %s67 = sphi 0, %s67
      %s69 = sphi 0, %s67
      %s70 = sphi 0, %s69
      %s84 = sphi 0, %s70
      %s90 = sphi 0, %s92
      %s93 = sphi 0, %s90
      %s94 = sphi 0, %s93
      %s110 = sphi 0, %s94
    $region4: #{conv_layer_forward.1} parent=1 // loop_header_branch
      %15 = sbr.rel (%p13) target = $region8
    $region5: #{conv_layer_forward.1} parent=1 // loop_body
      %s17 = ssub.s32 %s12, 1
      %s18 = ssub.s32 %s12, 2
      %s19 = sadd.s32 %s12, 1
      %s20 = ssub.s32 %s12, %s19
      %p21 = scmp.eq.s32.totalorder %s20, 0
      %s23 = sadd.s32 %s22, 1
      %s24 = scalar_select %p21, %s22, %s23
      %p27 = pneg %p21
      %p28 = scmp.eq.s32.totalorder %s12, 1
      %p29 = por %p27, %p28
      %p30 = scmp.ne.s32.totalorder %s22, %s25
      %p31 = scmp.eq.s32.totalorder %s12, 0
      %p32 = por %p30, %p31
      %p33 = scmp.ne.s32.totalorder %s22, %s25
      %p34 = scmp.eq.s32.totalorder %s17, 1
      %p35 = por %p33, %p34
      %p36 = scmp.ne.s32.totalorder %s25, %s26
      %p37 = scmp.eq.s32.totalorder %s17, 0
      %p38 = por %p36, %p37
      %p39 = scmp.ne.s32.totalorder %s25, %s26
      %p40 = scmp.eq.s32.totalorder %s18, 1
      %p41 = por %p39, %p40
      %p43 = scmp.ne.s32.totalorder %s26, %s42
      %p44 = scmp.eq.s32.totalorder %s18, 0
      %p45 = por %p43, %p44
      %s47 = sadd.s32 %s46, 1
      %p50 = scmp.eq.s32.totalorder %s12, 1
      %p51 = scmp.ne.s32.totalorder %s46, %s48
      %p52 = scmp.eq.s32.totalorder %s12, 0
      %p53 = por %p51, %p52
      %p54 = scmp.ne.s32.totalorder %s46, %s48
      %p55 = scmp.eq.s32.totalorder %s17, 1
      %p56 = por %p54, %p55
      %p57 = scmp.ne.s32.totalorder %s48, %s49
      %p58 = scmp.eq.s32.totalorder %s17, 0
      %p59 = por %p57, %p58
      %p60 = scmp.ne.s32.totalorder %s48, %s49
      %p61 = scmp.eq.s32.totalorder %s18, 1
      %p62 = por %p60, %p61
      %p64 = scmp.ne.s32.totalorder %s49, %s63
      %p65 = scmp.eq.s32.totalorder %s18, 0
      %p66 = por %p64, %p65
      %s68 = sadd.s32 %s67, 1
      %p71 = scmp.eq.s32.totalorder %s12, 1
      %p72 = scmp.ne.s32.totalorder %s67, %s69
      %p73 = scmp.eq.s32.totalorder %s12, 0
      %p74 = por %p72, %p73
      %p75 = scmp.ne.s32.totalorder %s67, %s69
      %p76 = scmp.eq.s32.totalorder %s17, 1
      %p77 = por %p75, %p76
      %p78 = scmp.ne.s32.totalorder %s69, %s70
      %p79 = scmp.eq.s32.totalorder %s17, 0
      %p80 = por %p78, %p79
      %p81 = scmp.ne.s32.totalorder %s69, %s70
      %p82 = scmp.eq.s32.totalorder %s18, 1
      %p83 = por %p81, %p82
      %p85 = scmp.ne.s32.totalorder %s70, %s84
      %p86 = scmp.eq.s32.totalorder %s18, 0
      %p87 = por %p85, %p86
      %s88 = ssub.s32 %s12, %s19
      %p89 = scmp.eq.s32.totalorder %s88, 0
      %s91 = sadd.s32 %s90, 1
      %s92 = scalar_select %p89, %s90, %s91
      %p95 = pneg %p89
      %p96 = scmp.eq.s32.totalorder %s12, 1
      %p97 = por %p95, %p96
      %p98 = scmp.ne.s32.totalorder %s90, %s93
      %p99 = scmp.eq.s32.totalorder %s12, 0
      %p100 = por %p98, %p99
      %p101 = scmp.ne.s32.totalorder %s90, %s93
      %p102 = scmp.eq.s32.totalorder %s17, 1
      %p103 = por %p101, %p102
      %p104 = scmp.ne.s32.totalorder %s93, %s94
      %p105 = scmp.eq.s32.totalorder %s17, 0
      %p106 = por %p104, %p105
      %p107 = scmp.ne.s32.totalorder %s93, %s94
      %p108 = scmp.eq.s32.totalorder %s18, 1
      %p109 = por %p107, %p108
      %p111 = scmp.ne.s32.totalorder %s94, %s110
      %p112 = scmp.eq.s32.totalorder %s18, 0
      %p113 = por %p111, %p112
      %p114 = scmp.le.s32.totalorder 1, %s12
      %p115 = scmp.lt.s32.totalorder %s12, 3
      %p116 = pnand %p114, %p115
      %p117 = pneg %p116
      // Predicated region
      $region9: #{conv_layer_forward.1} parent=5 // pred_check
        _
      $region10: #{conv_layer_forward.1} parent=5 // pred_check_branch
        %119 = sbr.rel (%p116) target = $region12
      $region11: #{conv_layer_forward.1} parent=5 // pred_region
        %s120 = ssub.s32 %s12, 1
        // Predicated region
        $region13: #{conv_layer_forward.1} parent=11 // pred_check
          %p121 = pneg %p59
        $region14: #{conv_layer_forward.1} parent=11 // pred_check_branch
          %123 = sbr.rel (%p121) target = $region16
        $region15: #{conv_layer_forward.1} parent=11 // pred_region
          _
        $region16: #{conv_layer_forward.1} parent=11 // pred_fallthru
          _
        // Predicated region
        $region17: #{conv_layer_forward.1} parent=11 // pred_check
          %p124 = pneg %p80
        $region18: #{conv_layer_forward.1} parent=11 // pred_check_branch
          %126 = sbr.rel (%p124) target = $region20
        $region19: #{conv_layer_forward.1} parent=11 // pred_region
          _
        $region20: #{conv_layer_forward.1} parent=11 // pred_fallthru
          _
      $region12: #{conv_layer_forward.1} parent=5 // pred_fallthru
        _
      %p127 = scmp.lt.s32.totalorder %s12, 2
      // Predicated region
      $region21: #{conv_layer_forward.1} parent=5 // pred_check
        %p128 = pneg %p127
      $region22: #{conv_layer_forward.1} parent=5 // pred_check_branch
        %130 = sbr.rel (%p128) target = $region24
      $region23: #{conv_layer_forward.1} parent=5 // pred_region
        // Predicated region
        $region25: #{conv_layer_forward.1} parent=23 // pred_check
          %p131 = pneg %p32
        $region26: #{conv_layer_forward.1} parent=23 // pred_check_branch
          %133 = sbr.rel (%p131) target = $region28
        $region27: #{conv_layer_forward.1} parent=23 // pred_region
          %p134 = scmp.lt.s32.totalorder %s12, 1
          %s135 = scalar_select %p134, %s12, 1
          %s136 = smul.addr %s135, 8
          %s137 = smul.addr %s136, 8
          %s138 = scalar_lea.vmem %s0, %s137
        $region28: #{conv_layer_forward.1} parent=23 // pred_fallthru
          _
      $region24: #{conv_layer_forward.1} parent=5 // pred_fallthru
        _
      %p139 = scmp.le.s32.totalorder 1, %s12
      %p140 = scmp.lt.s32.totalorder %s12, 3
      %p141 = pnand %p139, %p140
      %p142 = pneg %p141
      // Predicated region
      $region29: #{conv_layer_forward.1} parent=5 // pred_check
        _
      $region30: #{conv_layer_forward.1} parent=5 // pred_check_branch
        %144 = sbr.rel (%p141) target = $region32
      $region31: #{conv_layer_forward.1} parent=5 // pred_region
        %s145 = ssub.s32 %s12, 1
        %p146 = scmp.lt.s32.totalorder %s17, 1
        %s147 = scalar_select %p146, %s17, 1
        %s148 = smul.addr %s147, 8
        %s149 = smul.addr %s148, 8
        %s150 = scalar_lea.vmem %s0, %s149
        %p151 = pneg %p38
        %p152 = pneg %p35
        %p153 = pneg %p59
        %p154 = pneg %p56
        %p155 = pneg %p80
        %p156 = pneg %p77
        %p157 = pneg %p106
        %p158 = pneg %p103
        %s159 = sand.u32 %s93, 1
        %s160 = scalar_lea.sflag [#allocation3], %s159
        %s161 = sand.u32 %s93, 1
        %s162 = smul.addr %s161, 32
        %s163 = scalar_lea.vmem [#allocation2], %s162
        %p164 = scmp.lt.s32.totalorder %s17, 1
        %s165 = scalar_select %p164, %s17, 1
        %s166 = smul.addr %s165, 8
        %s167 = smul.addr %s166, 8
        %s168 = scalar_lea.vmem %s0, %s167
        %v169 = vld [vmem:[%s168] sm:$0xff]
        %v170 = vld [vmem:[%s168 + $0x8] sm:$0xff]
        %v171 = vld [vmem:[%s168 + $0x10] sm:$0xff]
        %v172 = vld [vmem:[%s168 + $0x18] sm:$0xff]
        %v173 = vld [vmem:[%s168 + $0x20] sm:$0xff]
        %v174 = vld [vmem:[%s168 + $0x28] sm:$0xff]
        %v175 = vld [vmem:[%s168 + $0x30] sm:$0xff]
        %v176 = vld [vmem:[%s168 + $0x38] sm:$0xff]
        %v178 = vrot.slane %v176, 7
        %vm183 = vcmask 1040384
        %v184 = vrot.slane %v170, 7
        %v185 = vrot.slane %v172, 7
        %v186 = vsel %vm183, %v184, %v185
        %v187 = vrot.slane %v174, 7
        %v188 = vsel %vm183, %v185, %v187
        %v189 = vsel %vm183, %v187, %v178
        %v194 = vsel %vm183, %v178, %v184
        %v195 = vld [vmem:[%s1] sm:$0xff]
        %v196 = vld [vmem:[%s1 + $0x8] sm:$0xff]
        %v197 = vld [vmem:[%s1 + $0x10] sm:$0xff]
        %v198 = vld [vmem:[%s1 + $0x18] sm:$0xff]
        %v199 = vld [vmem:[%s1 + $0x20] sm:$0xff]
        %v200 = vld [vmem:[%s1 + $0x28] sm:$0xff]
        %v201 = vld [vmem:[%s1 + $0x30] sm:$0xff]
        %v202 = vld [vmem:[%s1 + $0x38] sm:$0xff]
        %v203 = vld [vmem:[%s1 + $0x40] sm:$0xff]
        %v204 = vld [vmem:[%s1 + $0x48] sm:$0xff]
        %v205 = vld [vmem:[%s1 + $0x50] sm:$0xff]
        %v206 = vld [vmem:[%s1 + $0x58] sm:$0xff]
        %v207 = vld [vmem:[%s1 + $0x60] sm:$0xff]
        %v208 = vld [vmem:[%s1 + $0x68] sm:$0xff]
        %v209 = vld [vmem:[%s1 + $0x70] sm:$0xff]
        %v210 = vld [vmem:[%s1 + $0x78] sm:$0xff]
        %v211 = vld [vmem:[%s1 + $0x80] sm:$0xff]
        %v212 = vld [vmem:[%s1 + $0x88] sm:$0xff]
        %v213 = vld [vmem:[%s1 + $0x90] sm:$0xff]
        %v214 = vld [vmem:[%s1 + $0x98] sm:$0xff]
        %v215 = vld [vmem:[%s1 + $0xa0] sm:$0xff]
        %v216 = vld [vmem:[%s1 + $0xa8] sm:$0xff]
        %v217 = vld [vmem:[%s1 + $0xb0] sm:$0xff]
        %v218 = vld [vmem:[%s1 + $0xb8] sm:$0xff]
        %v219 = vld [vmem:[%s1 + $0xc0] sm:$0xff]
        %v220 = vld [vmem:[%s1 + $0xc8] sm:$0xff]
        %v221 = vld [vmem:[%s1 + $0xd0] sm:$0xff]
        %v222 = vld [vmem:[%s1 + $0xd8] sm:$0xff]
        %v223 = vld [vmem:[%s1 + $0xe0] sm:$0xff]
        %v224 = vld [vmem:[%s1 + $0xe8] sm:$0xff]
        %v225 = vld [vmem:[%s1 + $0xf0] sm:$0xff]
        %v226 = vld [vmem:[%s1 + $0xf8] sm:$0xff]
        %v227 = vld [vmem:[%s1 + $0x100] sm:$0xff]
        %v228 = vld [vmem:[%s1 + $0x108] sm:$0xff]
        %v229 = vld [vmem:[%s1 + $0x110] sm:$0xff]
        %v230 = vld [vmem:[%s1 + $0x118] sm:$0xff]
        %v231 = vld [vmem:[%s1 + $0x120] sm:$0xff]
        %v232 = vld [vmem:[%s1 + $0x128] sm:$0xff]
        %v233 = vld [vmem:[%s1 + $0x130] sm:$0xff]
        %v234 = vld [vmem:[%s1 + $0x138] sm:$0xff]
        %v235 = vld [vmem:[%s1 + $0x140] sm:$0xff]
        %v236 = vld [vmem:[%s1 + $0x148] sm:$0xff]
        %v237 = vld [vmem:[%s1 + $0x150] sm:$0xff]
        %v238 = vld [vmem:[%s1 + $0x158] sm:$0xff]
        %v239 = vld [vmem:[%s1 + $0x160] sm:$0xff]
        %v240 = vld [vmem:[%s1 + $0x168] sm:$0xff]
        %v241 = vld [vmem:[%s1 + $0x170] sm:$0xff]
        %v242 = vld [vmem:[%s1 + $0x178] sm:$0xff]
        %v243 = vld [vmem:[%s2] sm:$0x1]
        %v245 = vperm.slane %v243, 0
        %247 = vmatpush.msra.mxu0 %v210
        %248 = vmatpush.msra.mxu0 %v209
        %249 = vmatpush.msra.mxu0 %v208
        %250 = vmatpush.msra.mxu0 %v207
        %251 = vmatpush.msra.mxu0 %v206
        %252 = vmatpush.msra.mxu0 %v205
        %253 = vmatpush.msra.mxu0 %v204
        %254 = vmatpush.msra.mxu0 %v203
        %255 = vmatpush.msra.mxu0 %v202
        %256 = vmatpush.msra.mxu0 %v201
        %257 = vmatpush.msra.mxu0 %v200
        %258 = vmatpush.msra.mxu0 %v199
        %259 = vmatpush.msra.mxu0 %v198
        %260 = vmatpush.msra.mxu0 %v197
        %261 = vmatpush.msra.mxu0 %v196
        %262 = vmatpush.msra.mxu0 %v195
        %263 = vmatmul.f32.gmra.mxu0 %v194
        %v264 = vpop.f32.mrf.mxu0
        %v265 = vadd.f32 %v245, %v264
        %266 = vmatmul.f32.gmra.mxu0 %v186
        %v267 = vpop.f32.mrf.mxu0
        %v268 = vadd.f32 %v245, %v267
        %269 = vmatmul.f32.gmra.mxu0 %v188
        %v270 = vpop.f32.mrf.mxu0
        %v271 = vadd.f32 %v245, %v270
        %272 = vmatmul.f32.gmra.mxu0 %v189
        %v273 = vpop.f32.mrf.mxu0
        %v274 = vadd.f32 %v245, %v273
        %275 = vdwg.mxu0
        %276 = vmatpush.msra.mxu0 %v226
        %277 = vmatpush.msra.mxu0 %v225
        %278 = vmatpush.msra.mxu0 %v224
        %279 = vmatpush.msra.mxu0 %v223
        %280 = vmatpush.msra.mxu0 %v222
        %281 = vmatpush.msra.mxu0 %v221
        %282 = vmatpush.msra.mxu0 %v220
        %283 = vmatpush.msra.mxu0 %v219
        %284 = vmatpush.msra.mxu0 %v218
        %285 = vmatpush.msra.mxu0 %v217
        %286 = vmatpush.msra.mxu0 %v216
        %287 = vmatpush.msra.mxu0 %v215
        %288 = vmatpush.msra.mxu0 %v214
        %289 = vmatpush.msra.mxu0 %v213
        %290 = vmatpush.msra.mxu0 %v212
        %291 = vmatpush.msra.mxu0 %v211
        %292 = vmatmul.f32.gmra.mxu0 %v169
        %v293 = vpop.f32.mrf.mxu0
        %v294 = vadd.f32 %v265, %v293
        %295 = vmatmul.f32.gmra.mxu0 %v171
        %v296 = vpop.f32.mrf.mxu0
        %v297 = vadd.f32 %v268, %v296
        %298 = vmatmul.f32.gmra.mxu0 %v173
        %v299 = vpop.f32.mrf.mxu0
        %v300 = vadd.f32 %v271, %v299
        %301 = vmatmul.f32.gmra.mxu0 %v175
        %v302 = vpop.f32.mrf.mxu0
        %v303 = vadd.f32 %v274, %v302
        %304 = vdwg.mxu0
        %305 = vmatpush.msra.mxu0 %v242
        %306 = vmatpush.msra.mxu0 %v241
        %307 = vmatpush.msra.mxu0 %v240
        %308 = vmatpush.msra.mxu0 %v239
        %309 = vmatpush.msra.mxu0 %v238
        %310 = vmatpush.msra.mxu0 %v237
        %311 = vmatpush.msra.mxu0 %v236
        %312 = vmatpush.msra.mxu0 %v235
        %313 = vmatpush.msra.mxu0 %v234
        %314 = vmatpush.msra.mxu0 %v233
        %315 = vmatpush.msra.mxu0 %v232
        %316 = vmatpush.msra.mxu0 %v231
        %317 = vmatpush.msra.mxu0 %v230
        %318 = vmatpush.msra.mxu0 %v229
        %319 = vmatpush.msra.mxu0 %v228
        %320 = vmatpush.msra.mxu0 %v227
        %321 = vmatmul.f32.gmra.mxu0 %v170
        %v322 = vpop.f32.mrf.mxu0
        %v323 = vadd.f32 %v294, %v322
        %324 = vmatmul.f32.gmra.mxu0 %v172
        %v325 = vpop.f32.mrf.mxu0
        %v326 = vadd.f32 %v297, %v325
        %327 = vmatmul.f32.gmra.mxu0 %v174
        %v328 = vpop.f32.mrf.mxu0
        %v329 = vadd.f32 %v300, %v328
        %330 = vmatmul.f32.gmra.mxu0 %v176
        %v331 = vpop.f32.mrf.mxu0
        %v332 = vadd.f32 %v303, %v331
        %333 = vdwg.mxu0
        %vm334 = vcmp.gt.f32.partialorder %v323, 0.0
        %vm335 = vcmp.gt.f32.partialorder %v326, 0.0
        %vm336 = vcmp.gt.f32.partialorder %v329, 0.0
        %vm337 = vcmp.gt.f32.partialorder %v332, 0.0
        %v338 = vmin.f32 %v323, 0.0
        %v339 = vmin.f32 %v326, 0.0
        %v340 = vmin.f32 %v329, 0.0
        %v341 = vmin.f32 %v332, 0.0
        %v342 = vmul.f32 %v338, 1.442695
        %v343 = vpow.pop %v342
        %v344 = vmul.f32 %v339, 1.442695
        %v345 = vpow.pop %v344
        %v346 = vmul.f32 %v340, 1.442695
        %v347 = vpow.pop %v346
        %v348 = vmul.f32 %v341, 1.442695
        %v349 = vpow.pop %v348
        %v350 = vsub.f32 %v343, 1.0
        %v351 = vsub.f32 %v345, 1.0
        %v352 = vsub.f32 %v347, 1.0
        %v353 = vsub.f32 %v349, 1.0
        %v354 = vsel %vm334, %v323, %v350
        %v355 = vsel %vm335, %v326, %v351
        %v356 = vsel %vm336, %v329, %v352
        %v357 = vsel %vm337, %v332, %v353
        %358 = vst [vmem:[%s163] sm:$0xff] %v354
        %359 = vst [vmem:[%s163 + $0x8] sm:$0xff] %v355
        %360 = vst [vmem:[%s163 + $0x10] sm:$0xff] %v356
        %361 = vst [vmem:[%s163 + $0x18] sm:$0xff] %v357
        %s362 = sand.u32 %s93, 1
        %s363 = scalar_lea.sflag [#allocation3], %s362
        %s364 = sand.u32 %s93, 1
        %s365 = smul.addr %s364, 32
        %s366 = scalar_lea.vmem [#allocation2], %s365
        // Predicated region
        $region33: #{conv_layer_forward.1} parent=31 // pred_check
          %p367 = pneg %p103
        $region34: #{conv_layer_forward.1} parent=31 // pred_check_branch
          %369 = sbr.rel (%p367) target = $region36
        $region35: #{conv_layer_forward.1} parent=31 // pred_region
          %371 = vsyncadd %s363, 0
          %s372 = smul.addr %s17, 4
          %s373 = smul.addr %s372, 8
          %s374 = scalar_lea.hbm %s3, %s373
          %s375 = sshll.u32 %s366, 4
          %s376 = int_to_ptr.vmem [resolvable:$true] %s375
          %s377 = sshll.u32 %s374, 4
          %s378 = int_to_ptr.hbm [resolvable:$true] %s377
          %383 = dma.vmem_to_hbm [thread:$0]  %s376, 512, %s378, %s363, 128, 128, 8
        $region36: #{conv_layer_forward.1} parent=31 // pred_fallthru
          _
      $region32: #{conv_layer_forward.1} parent=5 // pred_fallthru
        _
      %p384 = scmp.le.s32.totalorder 2, %s12
      // Predicated region
      $region37: #{conv_layer_forward.1} parent=5 // pred_check
        %p385 = pneg %p384
      $region38: #{conv_layer_forward.1} parent=5 // pred_check_branch
        %387 = sbr.rel (%p385) target = $region40
      $region39: #{conv_layer_forward.1} parent=5 // pred_region
        %s388 = ssub.s32 %s12, 2
        // Predicated region
        $region41: #{conv_layer_forward.1} parent=39 // pred_check
          %p389 = pneg %p109
        $region42: #{conv_layer_forward.1} parent=39 // pred_check_branch
          %391 = sbr.rel (%p389) target = $region44
        $region43: #{conv_layer_forward.1} parent=39 // pred_region
          %s392 = sand.u32 %s94, 1
          %s393 = scalar_lea.sflag [#allocation3], %s392
          %s394 = sand.u32 %s94, 1
          %s395 = smul.addr %s394, 32
          %s396 = scalar_lea.vmem [#allocation2], %s395
          %398 = dma.done %s393, 512
        $region44: #{conv_layer_forward.1} parent=39 // pred_fallthru
          _
      $region40: #{conv_layer_forward.1} parent=5 // pred_fallthru
        _
    $region6: #{conv_layer_forward.1} parent=1 // loop_footer
      %s16 = sadd.s32 1, %s12
    $region7: #{conv_layer_forward.1} parent=1 // loop_footer_branch
      %11 = sbr.rel target = $region3
    $region8: #{conv_layer_forward.1} parent=1 // loop_exit
      _
    %399 = vsyncpa [#allocation3], 1
    %s400 = scalar_lea.sflag [#allocation3], 1
    %401 = vsyncpa %s400, 1

</llo_original>
